<compile_context>
chip_gen: v5e
topology: v5e:2x2
jax: 0.10.0
libtpu: 0.0.40
codegen_flags: <defaults>
</compile_context>

<pallas_src>
import jax
import jax.numpy as jnp
from jax.experimental import pallas as pl
from jax.experimental.pallas import tpu as pltpu

NEG_SLOPE = 0.01  # nn.LeakyReLU() default negative_slope


def _cse_kernel(x_ref, wsq_ref, wex_ref, o_ref):
    x = x_ref[...]                                     # (NB, C, HW) f32
    inv_hw = 1.0 / float(x.shape[-1])

    # --- AdaptiveAvgPool2d(1): mean over the lane-dense spatial axis --------
    z = jnp.sum(x, axis=-1) * inv_hw                   # (NB, C)

    # --- Conv_Squeeze (1x1, C -> C//2, no bias) + LeakyReLU -----------------
    z = jnp.dot(z, wsq_ref[...], preferred_element_type=jnp.float32)  # (NB, C//2)
    z = jnp.where(z > 0.0, z, NEG_SLOPE * z)

    # --- Conv_Excitation (1x1, C//2 -> C, no bias) + sigmoid ----------------
    z = jnp.dot(z, wex_ref[...], preferred_element_type=jnp.float32)  # (NB, C)
    s = 1.0 / (1.0 + jnp.exp(-z))                      # sigmoid

    # --- U * z.expand_as(U): broadcast the per-(sample, channel) gate over
    #     the spatial lanes and write the full-size product (read U once,
    #     write the result once -- no separate broadcast/multiply pass).
    s_full = jax.lax.broadcast_in_dim(s, x.shape, (0, 1))
    o_ref[...] = (x * s_full).astype(o_ref.dtype)


def _pick_block_batch(n, bytes_per_sample, target_bytes=2 << 20):
    """Samples per grid step: large enough to amortize per-step overhead,
    small enough that double-buffered in+out blocks fit every generation's
    scoped-VMEM default, and leaving >=2 grid steps whenever possible so
    dual-TensorCore chips (v7x) are both fed."""
    nb = max(1, min(n, target_bytes // max(bytes_per_sample, 1)))
    if n >= 2:
        nb = max(1, min(nb, n // 2))
    while n % nb:  # keep the grid exact (no partial blocks)
        nb -= 1
    return nb


def cse_pallas(x, w_squeeze, w_excite):
    """x: (N, C, H, W) f32.  w_squeeze: (C//2, C, 1, 1).  w_excite: (C, C//2, 1, 1)."""
    n, c, h, w = x.shape
    c2 = c // 2
    hw = h * w

    x3 = x.reshape(n, c, hw)                           # pure reshape of NCHW
    wsq_t = w_squeeze.reshape(c2, c).T                 # (C, C//2)
    wex_t = w_excite.reshape(c, c2).T                  # (C//2, C)

    nb = _pick_block_batch(n, c * hw * x.dtype.itemsize)
    grid = (n // nb,)

    out = pl.pallas_call(
        _cse_kernel,
        out_shape=jax.ShapeDtypeStruct((n, c, hw), x.dtype),
        grid_spec=pltpu.PrefetchScalarGridSpec(
            num_scalar_prefetch=0,
            grid=grid,
            in_specs=[
                pl.BlockSpec((nb, c, hw), lambda i: (i, 0, 0)),
                pl.BlockSpec((c, c2), lambda i: (0, 0)),   # resident weights
                pl.BlockSpec((c2, c), lambda i: (0, 0)),   # resident weights
            ],
            out_specs=pl.BlockSpec((nb, c, hw), lambda i: (i, 0, 0)),
        ),
        compiler_params=pltpu.CompilerParams(
            dimension_semantics=("parallel",)),
    )(x3, wsq_t, wex_t)

    return out.reshape(n, c, h, w)


def cse_reference(x, w_squeeze, w_excite):
    """Pure-JAX reference mirroring the PyTorch cSE.forward exactly."""
    n, c, h, w = x.shape
    c2 = c // 2
    z = jnp.mean(x, axis=(2, 3))                       # AdaptiveAvgPool2d(1)
    z = z @ w_squeeze.reshape(c2, c).T                 # Conv_Squeeze (no bias)
    z = jnp.where(z > 0.0, z, NEG_SLOPE * z)           # LeakyReLU
    z = z @ w_excite.reshape(c, c2).T                  # Conv_Excitation (no bias)
    s = jax.nn.sigmoid(z)
    return x * s[:, :, None, None]                     # U * z.expand_as(U)


if __name__ == "__main__":
    N, C, H, W = 2, 64, 16, 16
    key = jax.random.PRNGKey(0)
    kx, k1, k2 = jax.random.split(key, 3)
    x = jax.random.normal(kx, (N, C, H, W), jnp.float32)
    # PyTorch Conv2d weight shapes (out_ch, in_ch, 1, 1), bias=False.
    w_squeeze = jax.random.normal(k1, (C // 2, C, 1, 1), jnp.float32) / jnp.sqrt(1.0 * C)
    w_excite = jax.random.normal(k2, (C, C // 2, 1, 1), jnp.float32) / jnp.sqrt(0.5 * C)

    out = jax.block_until_ready(cse_pallas(x, w_squeeze, w_excite))
    ref = jax.block_until_ready(cse_reference(x, w_squeeze, w_excite))

    assert out.shape == x.shape and out.dtype == x.dtype
    err = float(jnp.max(jnp.abs(out - ref)))
    if err > 1e-3:
        raise AssertionError(f"Pallas cSE mismatch: max abs err = {err}")
    print("KERNEL_OK")
</pallas_src>

<mosaic_0001>
module attributes {stable_mosaic.version = 11 : i64} {
  func.func @_cse_kernel(%arg0: i32, %arg1: memref<1x64x256xf32, #tpu.memory_space<vmem>>, %arg2: memref<64x32xf32, #tpu.memory_space<vmem>>, %arg3: memref<32x64xf32, #tpu.memory_space<vmem>>, %arg4: memref<1x64x256xf32, #tpu.memory_space<vmem>>) attributes {dimension_semantics = [#tpu.dimension_semantics<parallel>], iteration_bounds = array<i64: 2>, scalar_prefetch = 0 : i64, scratch_operands = 0 : i64, tpu.core_type = #tpu.core_type<tc>, window_params = [{transform_indices = @transform_0, window_bounds = array<i64: 1, 64, 256>}, {pipeline_mode = #tpu.pipeline_mode<synchronous>, transform_indices = @transform_1, window_bounds = array<i64: 64, 32>}, {pipeline_mode = #tpu.pipeline_mode<synchronous>, transform_indices = @transform_2, window_bounds = array<i64: 32, 64>}, {transform_indices = @transform_3, window_bounds = array<i64: 1, 64, 256>}]} {
    %c0 = arith.constant 0 : index
    %c0_0 = arith.constant 0 : index
    %c0_1 = arith.constant 0 : index
    %0 = vector.load %arg1[%c0, %c0_0, %c0_1] : memref<1x64x256xf32, #tpu.memory_space<vmem>>, vector<1x64x256xf32>
    %cst = arith.constant dense<0.000000e+00> : vector<1x64xf32>
    %1 = vector.multi_reduction <add>, %0, %cst [2] : vector<1x64x256xf32> to vector<1x64xf32>
    %cst_2 = arith.constant 3.906250e-03 : f32
    %2 = vector.broadcast %cst_2 : f32 to vector<1x64xf32>
    %3 = arith.mulf %1, %2 : vector<1x64xf32>
    %c0_3 = arith.constant 0 : index
    %c0_4 = arith.constant 0 : index
    %4 = vector.load %arg2[%c0_3, %c0_4] : memref<64x32xf32, #tpu.memory_space<vmem>>, vector<64x32xf32>
    %cst_5 = arith.constant dense<0.000000e+00> : vector<1x32xf32>
    %5 = tpu.matmul %3, %4, %cst_5 {dimension_numbers = #tpu.dot_dimension_numbers<[1], [0], [0], [1], [0, 0, 1, 1], [], []>} : vector<1x64xf32>, vector<64x32xf32>, vector<1x32xf32> -> vector<1x32xf32>
    %cst_6 = arith.constant 0.000000e+00 : f32
    %6 = vector.broadcast %cst_6 : f32 to vector<1x32xf32>
    %7 = arith.cmpf ogt, %5, %6 : vector<1x32xf32>
    %cst_7 = arith.constant 0.00999999977 : f32
    %8 = vector.broadcast %cst_7 : f32 to vector<1x32xf32>
    %9 = arith.mulf %8, %5 : vector<1x32xf32>
    %10 = arith.select %7, %5, %9 : vector<1x32xi1>, vector<1x32xf32>
    %c0_8 = arith.constant 0 : index
    %c0_9 = arith.constant 0 : index
    %11 = vector.load %arg3[%c0_8, %c0_9] : memref<32x64xf32, #tpu.memory_space<vmem>>, vector<32x64xf32>
    %cst_10 = arith.constant dense<0.000000e+00> : vector<1x64xf32>
    %12 = tpu.matmul %10, %11, %cst_10 {dimension_numbers = #tpu.dot_dimension_numbers<[1], [0], [0], [1], [0, 0, 1, 1], [], []>} : vector<1x32xf32>, vector<32x64xf32>, vector<1x64xf32> -> vector<1x64xf32>
    %cst_11 = arith.constant 0.000000e+00 : f32
    %13 = vector.broadcast %cst_11 : f32 to vector<1x64xf32>
    %14 = arith.subf %13, %12 : vector<1x64xf32>
    %15 = math.exp %14 : vector<1x64xf32>
    %cst_12 = arith.constant 1.000000e+00 : f32
    %16 = vector.broadcast %cst_12 : f32 to vector<1x64xf32>
    %17 = arith.addf %16, %15 : vector<1x64xf32>
    %cst_13 = arith.constant 1.000000e+00 : f32
    %18 = vector.broadcast %cst_13 : f32 to vector<1x64xf32>
    %19 = arith.divf %18, %17 : vector<1x64xf32>
    %20 = vector.shape_cast %19 : vector<1x64xf32> to vector<1x64x1xf32>
    %21 = vector.broadcast %20 : vector<1x64x1xf32> to vector<1x64x256xf32>
    %22 = arith.mulf %0, %21 : vector<1x64x256xf32>
    %c0_14 = arith.constant 0 : index
    %c0_15 = arith.constant 0 : index
    %c0_16 = arith.constant 0 : index
    %23 = vector.load %arg4[%c0_14, %c0_15, %c0_16] : memref<1x64x256xf32, #tpu.memory_space<vmem>>, vector<1x64x256xf32>
    tpu.vector_store %arg4[%c0_14, %c0_15, %c0_16], %22 {strides = array<i32>} : memref<1x64x256xf32, #tpu.memory_space<vmem>>, vector<1x64x256xf32>,
    return
  }
  func.func @transform_0(%arg0: i32) -> (i32, i32, i32) {
    %c0_i32 = arith.constant 0 : i32
    %c0_i32_0 = arith.constant 0 : i32
    %c0_i32_1 = arith.constant 0 : i32
    return %arg0, %c0_i32, %c0_i32_0 : i32, i32, i32
  }
  func.func @transform_1(%arg0: i32) -> (i32, i32) {
    %c0_i32 = arith.constant 0 : i32
    %c0_i32_0 = arith.constant 0 : i32
    %c0_i32_1 = arith.constant 0 : i32
    return %c0_i32, %c0_i32_0 : i32, i32
  }
  func.func @transform_2(%arg0: i32) -> (i32, i32) {
    %c0_i32 = arith.constant 0 : i32
    %c0_i32_0 = arith.constant 0 : i32
    %c0_i32_1 = arith.constant 0 : i32
    return %c0_i32, %c0_i32_0 : i32, i32
  }
  func.func @transform_3(%arg0: i32) -> (i32, i32, i32) {
    %c0_i32 = arith.constant 0 : i32
    %c0_i32_0 = arith.constant 0 : i32
    %c0_i32_1 = arith.constant 0 : i32
    return %arg0, %c0_i32, %c0_i32_0 : i32, i32, i32
  }
}

</mosaic_0001>

<llo_original>
// kernel: tpu_custom_call.1
$region0: #{tpu_custom_call.1}
  #allocation0 [shape = 'u32[]', space=smem, size = 0x4, offset = 0x4, fixed_abs, tag = 'smem constant byte address 0x4 - core index']
  #allocation1 [shape = 'u32[72,128]{1,0:T(1,128)}', space=vmem, size = 0x9000, scoped, tag = 'internal scratch']
  %s0 = inlined_call_operand.hbm [shape: f32[2,64,256], index: 0, kind: input, shape index: {}]
  %s1 = inlined_call_operand.vmem [shape: f32[64,32], index: 1, kind: input, shape index: {}]
  %s2 = inlined_call_operand.vmem [shape: f32[32,64], index: 2, kind: input, shape index: {}]
  %s3 = inlined_call_operand.hbm [shape: f32[2,64,256], index: 3, kind: output, shape index: {}]
  %s4 = sld [smem:[#allocation0]]
  $region49: #{tpu_custom_call.1} parent=0
    _
  %s6 = ssub.s32 1, %s4
  %s7 = scalar_select 0, %s6, %s4
  $region1: #{tpu_custom_call.1} parent=0
    #allocation2 [shape = 'u8[131072]{0}', space=vmem, size = 0x20000, scoped, tag = 'input window, operand 0']
    #allocation3 [shape = 's32[2]{0}', space=sflag, size = 0x8, scoped, tag = 'scoped memory for tpu_custom_call.1']
    #allocation4 [shape = 's32[2]{0}', space=sflag, size = 0x8, scoped, tag = 'scoped memory for tpu_custom_call.1']
    #allocation5 [shape = 'u8[131072]{0}', space=vmem, size = 0x20000, scoped, tag = 'output window, operand 0']
    %8 = vsyncpa [#allocation3], 0
    %s9 = scalar_lea.sflag [#allocation3], 1
    %10 = vsyncpa %s9, 0
    %11 = vsyncpa [#allocation4], 0
    %s12 = scalar_lea.sflag [#allocation4], 1
    %13 = vsyncpa %s12, 0
    loop: start=0, step=1, limit=4
    $region2: #{tpu_custom_call.1} parent=1 // loop_pre_header
      _
    $region3: #{tpu_custom_call.1} parent=1 // loop_header
      %s15 = sphi 0, %s19
      %p16 = scmp.ge.s32.totalorder %s15, 4
      %s25 = sphi 0, %s27
      %s28 = sphi 0, %s25
      %s29 = sphi 0, %s28
      %s45 = sphi 0, %s29
      %s49 = sphi 0, %s49
      %s51 = sphi 0, %s49
      %s52 = sphi 0, %s51
      %s66 = sphi 0, %s52
      %s70 = sphi 0, %s70
      %s72 = sphi 0, %s70
      %s73 = sphi 0, %s72
      %s87 = sphi 0, %s73
      %s93 = sphi 0, %s95
      %s96 = sphi 0, %s93
      %s97 = sphi 0, %s96
      %s113 = sphi 0, %s97
    $region4: #{tpu_custom_call.1} parent=1 // loop_header_branch
      %18 = sbr.rel (%p16) target = $region8
    $region5: #{tpu_custom_call.1} parent=1 // loop_body
      %s20 = ssub.s32 %s15, 1
      %s21 = ssub.s32 %s15, 2
      %s22 = sadd.s32 %s15, 1
      %s23 = ssub.s32 %s15, %s22
      %p24 = scmp.eq.s32.totalorder %s23, 0
      %s26 = sadd.s32 %s25, 1
      %s27 = scalar_select %p24, %s25, %s26
      %p30 = pneg %p24
      %p31 = scmp.eq.s32.totalorder %s15, 1
      %p32 = por %p30, %p31
      %p33 = scmp.ne.s32.totalorder %s25, %s28
      %p34 = scmp.eq.s32.totalorder %s15, 0
      %p35 = por %p33, %p34
      %p36 = scmp.ne.s32.totalorder %s25, %s28
      %p37 = scmp.eq.s32.totalorder %s20, 1
      %p38 = por %p36, %p37
      %p39 = scmp.ne.s32.totalorder %s28, %s29
      %p40 = scmp.eq.s32.totalorder %s20, 0
      %p41 = por %p39, %p40
      %p42 = scmp.ne.s32.totalorder %s28, %s29
      %p43 = scmp.eq.s32.totalorder %s21, 1
      %p44 = por %p42, %p43
      %p46 = scmp.ne.s32.totalorder %s29, %s45
      %p47 = scmp.eq.s32.totalorder %s21, 0
      %p48 = por %p46, %p47
      %s50 = sadd.s32 %s49, 1
      %p53 = scmp.eq.s32.totalorder %s15, 1
      %p54 = scmp.ne.s32.totalorder %s49, %s51
      %p55 = scmp.eq.s32.totalorder %s15, 0
      %p56 = por %p54, %p55
      %p57 = scmp.ne.s32.totalorder %s49, %s51
      %p58 = scmp.eq.s32.totalorder %s20, 1
      %p59 = por %p57, %p58
      %p60 = scmp.ne.s32.totalorder %s51, %s52
      %p61 = scmp.eq.s32.totalorder %s20, 0
      %p62 = por %p60, %p61
      %p63 = scmp.ne.s32.totalorder %s51, %s52
      %p64 = scmp.eq.s32.totalorder %s21, 1
      %p65 = por %p63, %p64
      %p67 = scmp.ne.s32.totalorder %s52, %s66
      %p68 = scmp.eq.s32.totalorder %s21, 0
      %p69 = por %p67, %p68
      %s71 = sadd.s32 %s70, 1
      %p74 = scmp.eq.s32.totalorder %s15, 1
      %p75 = scmp.ne.s32.totalorder %s70, %s72
      %p76 = scmp.eq.s32.totalorder %s15, 0
      %p77 = por %p75, %p76
      %p78 = scmp.ne.s32.totalorder %s70, %s72
      %p79 = scmp.eq.s32.totalorder %s20, 1
      %p80 = por %p78, %p79
      %p81 = scmp.ne.s32.totalorder %s72, %s73
      %p82 = scmp.eq.s32.totalorder %s20, 0
      %p83 = por %p81, %p82
      %p84 = scmp.ne.s32.totalorder %s72, %s73
      %p85 = scmp.eq.s32.totalorder %s21, 1
      %p86 = por %p84, %p85
      %p88 = scmp.ne.s32.totalorder %s73, %s87
      %p89 = scmp.eq.s32.totalorder %s21, 0
      %p90 = por %p88, %p89
      %s91 = ssub.s32 %s15, %s22
      %p92 = scmp.eq.s32.totalorder %s91, 0
      %s94 = sadd.s32 %s93, 1
      %s95 = scalar_select %p92, %s93, %s94
      %p98 = pneg %p92
      %p99 = scmp.eq.s32.totalorder %s15, 1
      %p100 = por %p98, %p99
      %p101 = scmp.ne.s32.totalorder %s93, %s96
      %p102 = scmp.eq.s32.totalorder %s15, 0
      %p103 = por %p101, %p102
      %p104 = scmp.ne.s32.totalorder %s93, %s96
      %p105 = scmp.eq.s32.totalorder %s20, 1
      %p106 = por %p104, %p105
      %p107 = scmp.ne.s32.totalorder %s96, %s97
      %p108 = scmp.eq.s32.totalorder %s20, 0
      %p109 = por %p107, %p108
      %p110 = scmp.ne.s32.totalorder %s96, %s97
      %p111 = scmp.eq.s32.totalorder %s21, 1
      %p112 = por %p110, %p111
      %p114 = scmp.ne.s32.totalorder %s97, %s113
      %p115 = scmp.eq.s32.totalorder %s21, 0
      %p116 = por %p114, %p115
      %p117 = scmp.le.s32.totalorder 1, %s15
      %p118 = scmp.lt.s32.totalorder %s15, 3
      %p119 = pnand %p117, %p118
      %p120 = pneg %p119
      // Predicated region
      $region9: #{tpu_custom_call.1} parent=5 // pred_check
        _
      $region10: #{tpu_custom_call.1} parent=5 // pred_check_branch
        %122 = sbr.rel (%p119) target = $region12
      $region11: #{tpu_custom_call.1} parent=5 // pred_region
        %s123 = ssub.s32 %s15, 1
        // Predicated region
        $region13: #{tpu_custom_call.1} parent=11 // pred_check
          %p124 = pneg %p62
        $region14: #{tpu_custom_call.1} parent=11 // pred_check_branch
          %126 = sbr.rel (%p124) target = $region16
        $region15: #{tpu_custom_call.1} parent=11 // pred_region
          _
        $region16: #{tpu_custom_call.1} parent=11 // pred_fallthru
          _
        // Predicated region
        $region17: #{tpu_custom_call.1} parent=11 // pred_check
          %p127 = pneg %p83
        $region18: #{tpu_custom_call.1} parent=11 // pred_check_branch
          %129 = sbr.rel (%p127) target = $region20
        $region19: #{tpu_custom_call.1} parent=11 // pred_region
          _
        $region20: #{tpu_custom_call.1} parent=11 // pred_fallthru
          _
      $region12: #{tpu_custom_call.1} parent=5 // pred_fallthru
        _
      %p130 = scmp.lt.s32.totalorder %s15, 2
      // Predicated region
      $region21: #{tpu_custom_call.1} parent=5 // pred_check
        %p131 = pneg %p130
      $region22: #{tpu_custom_call.1} parent=5 // pred_check_branch
        %133 = sbr.rel (%p131) target = $region24
      $region23: #{tpu_custom_call.1} parent=5 // pred_region
        // Predicated region
        $region25: #{tpu_custom_call.1} parent=23 // pred_check
          %p134 = pneg %p35
        $region26: #{tpu_custom_call.1} parent=23 // pred_check_branch
          %136 = sbr.rel (%p134) target = $region28
        $region27: #{tpu_custom_call.1} parent=23 // pred_region
          %s137 = sand.u32 %s25, 1
          %s138 = scalar_lea.sflag [#allocation3], %s137
          %s139 = sand.u32 %s25, 1
          %s140 = smul.addr %s139, 128
          %s141 = scalar_lea.vmem [#allocation2], %s140
          %143 = vsyncadd %s138, 0
          %s144 = smul.addr %s15, 16
          %s145 = smul.addr %s144, 8
          %s146 = scalar_lea.hbm %s0, %s145
          %s147 = sshll.u32 %s146, 4
          %s148 = int_to_ptr.hbm [resolvable:$true] %s147
          %s149 = sshll.u32 %s141, 4
          %s150 = int_to_ptr.vmem [resolvable:$true] %s149
          %155 = dma.hbm_to_vmem [thread:$0]  %s148, 2048, %s150, %s138, 256, 256, 16
        $region28: #{tpu_custom_call.1} parent=23 // pred_fallthru
          _
      $region24: #{tpu_custom_call.1} parent=5 // pred_fallthru
        _
      %p156 = scmp.le.s32.totalorder 1, %s15
      %p157 = scmp.lt.s32.totalorder %s15, 3
      %p158 = pnand %p156, %p157
      %p159 = pneg %p158
      // Predicated region
      $region29: #{tpu_custom_call.1} parent=5 // pred_check
        _
      $region30: #{tpu_custom_call.1} parent=5 // pred_check_branch
        %161 = sbr.rel (%p158) target = $region32
      $region31: #{tpu_custom_call.1} parent=5 // pred_region
        %s162 = ssub.s32 %s15, 1
        %s163 = sand.u32 %s28, 1
        %s164 = scalar_lea.sflag [#allocation3], %s163
        %s165 = sand.u32 %s28, 1
        %s166 = smul.addr %s165, 128
        %s167 = scalar_lea.vmem [#allocation2], %s166
        // Predicated region
        $region33: #{tpu_custom_call.1} parent=31 // pred_check
          %p168 = pneg %p41
        $region34: #{tpu_custom_call.1} parent=31 // pred_check_branch
          %170 = sbr.rel (%p168) target = $region36
        $region35: #{tpu_custom_call.1} parent=31 // pred_region
          %172 = dma.done %s164, 2048
        $region36: #{tpu_custom_call.1} parent=31 // pred_fallthru
          _
        %s173 = sand.u32 %s28, 1
        %s174 = scalar_lea.sflag [#allocation3], %s173
        %s175 = sand.u32 %s28, 1
        %s176 = smul.addr %s175, 128
        %s177 = scalar_lea.vmem [#allocation2], %s176
        %p178 = pneg %p41
        %p179 = pneg %p38
        %p180 = pneg %p62
        %p181 = pneg %p59
        %p182 = pneg %p83
        %p183 = pneg %p80
        %p184 = pneg %p109
        %p185 = pneg %p106
        %s186 = sand.u32 %s96, 1
        %s187 = scalar_lea.sflag [#allocation4], %s186
        %s188 = sand.u32 %s96, 1
        %s189 = smul.addr %s188, 128
        %s190 = scalar_lea.vmem [#allocation5], %s189
        %v191 = vld [vmem:[%s167] sm:$0xff]
        %v192 = vld [vmem:[%s167 + $0x8] sm:$0xff]
        %v193 = vld [vmem:[%s167 + $0x10] sm:$0xff]
        %v194 = vld [vmem:[%s167 + $0x18] sm:$0xff]
        %v195 = vld [vmem:[%s167 + $0x20] sm:$0xff]
        %v196 = vld [vmem:[%s167 + $0x28] sm:$0xff]
        %v197 = vld [vmem:[%s167 + $0x30] sm:$0xff]
        %v198 = vld [vmem:[%s167 + $0x38] sm:$0xff]
        %v199 = vld [vmem:[%s167 + $0x40] sm:$0xff]
        %v200 = vld [vmem:[%s167 + $0x48] sm:$0xff]
        %v201 = vld [vmem:[%s167 + $0x50] sm:$0xff]
        %v202 = vld [vmem:[%s167 + $0x58] sm:$0xff]
        %v203 = vld [vmem:[%s167 + $0x60] sm:$0xff]
        %v204 = vld [vmem:[%s167 + $0x68] sm:$0xff]
        %v205 = vld [vmem:[%s167 + $0x70] sm:$0xff]
        %v206 = vld [vmem:[%s167 + $0x78] sm:$0xff]
        %v207 = vadd.f32 %v191, %v192
        %208 = vadd.xlane.f32.xlu0 %v207
        %v209 = vpop.xlane.xlu0 %208
        %v210 = vadd.f32 %v193, %v194
        %211 = vadd.xlane.f32.xlu0 %v210
        %v212 = vpop.xlane.xlu0 %211
        %v213 = vadd.f32 %v195, %v196
        %214 = vadd.xlane.f32.xlu0 %v213
        %v215 = vpop.xlane.xlu0 %214
        %v216 = vadd.f32 %v197, %v198
        %217 = vadd.xlane.f32.xlu0 %v216
        %v218 = vpop.xlane.xlu0 %217
        %v219 = vadd.f32 %v199, %v200
        %220 = vadd.xlane.f32.xlu0 %v219
        %v221 = vpop.xlane.xlu0 %220
        %v222 = vadd.f32 %v201, %v202
        %223 = vadd.xlane.f32.xlu0 %v222
        %v224 = vpop.xlane.xlu0 %223
        %v225 = vadd.f32 %v203, %v204
        %226 = vadd.xlane.f32.xlu0 %v225
        %v227 = vpop.xlane.xlu0 %226
        %v228 = vadd.f32 %v205, %v206
        %229 = vadd.xlane.f32.xlu0 %v228
        %v230 = vpop.xlane.xlu0 %229
        %v231 = vmul.f32 %v209, 0.00390625
        %v232 = vmul.f32 %v212, 0.00390625
        %v233 = vmul.f32 %v215, 0.00390625
        %v234 = vmul.f32 %v218, 0.00390625
        %v235 = vmul.f32 %v221, 0.00390625
        %v236 = vmul.f32 %v224, 0.00390625
        %v237 = vmul.f32 %v227, 0.00390625
        %v238 = vmul.f32 %v230, 0.00390625
        %v239 = vld [vmem:[%s1] sm:$0xff]
        %v240 = vld [vmem:[%s1 + $0x8] sm:$0xff]
        %v241 = vld [vmem:[%s1 + $0x10] sm:$0xff]
        %v242 = vld [vmem:[%s1 + $0x18] sm:$0xff]
        %v243 = vld [vmem:[%s1 + $0x20] sm:$0xff]
        %v244 = vld [vmem:[%s1 + $0x28] sm:$0xff]
        %v245 = vld [vmem:[%s1 + $0x30] sm:$0xff]
        %v246 = vld [vmem:[%s1 + $0x38] sm:$0xff]
        %v255 = vlaneseq
        %v256 = vand.u32 %v255, 127
        %v257 = vperm.slane %v231, %v256
        %v258 = vadd.s32 %v256, 4294967288
        %v259 = vperm.slane %v232, %v258
        %vm260 = vcmask 130112
        %v261 = vsel %vm260, %v259, %v257
        %v262 = vadd.s32 %v256, 4294967280
        %v263 = vperm.slane %v233, %v262
        %vm264 = vcmask 195712
        %v265 = vsel %vm264, %v263, %v261
        %v266 = vadd.s32 %v256, 4294967272
        %v267 = vperm.slane %v234, %v266
        %vm268 = vcmask 261312
        %v269 = vsel %vm268, %v267, %v265
        %v270 = vadd.s32 %v256, 4294967264
        %v271 = vperm.slane %v235, %v270
        %vm272 = vcmask 326912
        %v273 = vsel %vm272, %v271, %v269
        %v274 = vadd.s32 %v256, 4294967256
        %v275 = vperm.slane %v236, %v274
        %vm276 = vcmask 392512
        %v277 = vsel %vm276, %v275, %v273
        %v278 = vadd.s32 %v256, 4294967248
        %v279 = vperm.slane %v237, %v278
        %vm280 = vcmask 458112
        %v281 = vsel %vm280, %v279, %v277
        %v282 = vadd.s32 %v256, 4294967240
        %v283 = vperm.slane %v238, %v282
        %vm284 = vcmask 523712
        %v285 = vsel %vm284, %v283, %v281
        %vm286 = vcmask 523264
        %v287 = vsel %vm286, %v285, 0
        %289 = vmatpush.msra.mxu0 0.0
        %290 = vmatpush.msra.mxu0 0.0
        %291 = vmatpush.msra.mxu0 0.0
        %292 = vmatpush.msra.mxu0 0.0
        %293 = vmatpush.msra.mxu0 0.0
        %294 = vmatpush.msra.mxu0 0.0
        %295 = vmatpush.msra.mxu0 0.0
        %296 = vmatpush.msra.mxu0 0.0
        %297 = vmatpush.msra.mxu0 %v246
        %298 = vmatpush.msra.mxu0 %v245
        %299 = vmatpush.msra.mxu0 %v244
        %300 = vmatpush.msra.mxu0 %v243
        %301 = vmatpush.msra.mxu0 %v242
        %302 = vmatpush.msra.mxu0 %v241
        %303 = vmatpush.msra.mxu0 %v240
        %304 = vmatpush.msra.mxu0 %v239
        %305 = vmatmul.f32.gmra.mxu0 %v287
        %v306 = vpop.f32.mrf.mxu0
        %v307 = vadd.f32 0.0, %v306
        %308 = vdwg.mxu0
        %vm309 = vcmp.gt.f32.partialorder %v307, 0.0
        %v310 = vmul.f32 %v307, 0.01
        %v311 = vsel %vm309, %v307, %v310
        %v312 = vld [vmem:[%s2] sm:$0xff]
        %v313 = vld [vmem:[%s2 + $0x8] sm:$0xff]
        %v314 = vld [vmem:[%s2 + $0x10] sm:$0xff]
        %v315 = vld [vmem:[%s2 + $0x18] sm:$0xff]
        %vm316 = vcmask 261120
        %v318 = vsel %vm316, %v311, 0
        %320 = vmatpush.msra.mxu0 0.0
        %321 = vmatpush.msra.mxu0 0.0
        %322 = vmatpush.msra.mxu0 0.0
        %323 = vmatpush.msra.mxu0 0.0
        %324 = vmatpush.msra.mxu0 0.0
        %325 = vmatpush.msra.mxu0 0.0
        %326 = vmatpush.msra.mxu0 0.0
        %327 = vmatpush.msra.mxu0 0.0
        %328 = vmatpush.msra.mxu0 0.0
        %329 = vmatpush.msra.mxu0 0.0
        %330 = vmatpush.msra.mxu0 0.0
        %331 = vmatpush.msra.mxu0 0.0
        %332 = vmatpush.msra.mxu0 %v315
        %333 = vmatpush.msra.mxu0 %v314
        %334 = vmatpush.msra.mxu0 %v313
        %335 = vmatpush.msra.mxu0 %v312
        %336 = vmatmul.f32.gmra.mxu0 %v318
        %v337 = vpop.f32.mrf.mxu0
        %v338 = vadd.f32 0.0, %v337
        %339 = vdwg.mxu0
        %v340 = vsub.f32 0.0, %v338
        %v341 = vmul.f32 %v340, 1.442695
        %v342 = vpow.pop %v341
        %v343 = vadd.f32 %v342, 1.0
        %v344 = vrcp.pop %v343
        %v345 = vmul.f32 %v343, %v344
        %v346 = vsub.f32 1.0, %v345
        %v347 = vmul.f32 %v344, %v346
        %v348 = vadd.f32 %v344, %v347
        %vm349 = vweird.f32 %v343
        %vm350 = vweird.f32 %v344
        %vm351 = vmor %vm349, %vm350
        %v352 = vsel %vm351, %v344, %v348
        %v353 = vand.u32 2147483647, %v343
        %vm354 = vcmp.eq.f32.partialorder %v353, 8.507059e+37
        %v355 = vand.u32 %v343, 2147483648
        %v356 = vor.u32 1.1754944e-38, %v355
        %v357 = vsel %vm354, %v356, %v352
        %v358 = vmul.f32 1.0, %v357
        %v359 = vperm.slane %v358, 0
        %v360 = vlaneseq
        %v361 = vshrl.u32 %v360, 7
        %363 = vset.pattern.permute.xlu0 %v361
        %364 = vperm.xlu0 %363, %v359
        %v365 = vpop.permute.xlu0 %364
        %v366 = vlaneseq
        %v367 = vshrl.u32 %v366, 7
        %v368 = vadd.s32 %v367, 8
        %369 = vset.pattern.permute.xlu0 %v368
        %370 = vperm.xlu0 %369, %v359
        %v371 = vpop.permute.xlu0 %370
        %v372 = vlaneseq
        %v373 = vshrl.u32 %v372, 7
        %v374 = vadd.s32 %v373, 16
        %375 = vset.pattern.permute.xlu0 %v374
        %376 = vperm.xlu0 %375, %v359
        %v377 = vpop.permute.xlu0 %376
        %v378 = vlaneseq
        %v379 = vshrl.u32 %v378, 7
        %v380 = vadd.s32 %v379, 24
        %381 = vset.pattern.permute.xlu0 %v380
        %382 = vperm.xlu0 %381, %v359
        %v383 = vpop.permute.xlu0 %382
        %v384 = vlaneseq
        %v385 = vshrl.u32 %v384, 7
        %v386 = vadd.s32 %v385, 32
        %387 = vset.pattern.permute.xlu0 %v386
        %388 = vperm.xlu0 %387, %v359
        %v389 = vpop.permute.xlu0 %388
        %v390 = vlaneseq
        %v391 = vshrl.u32 %v390, 7
        %v392 = vadd.s32 %v391, 40
        %393 = vset.pattern.permute.xlu0 %v392
        %394 = vperm.xlu0 %393, %v359
        %v395 = vpop.permute.xlu0 %394
        %v396 = vlaneseq
        %v397 = vshrl.u32 %v396, 7
        %v398 = vadd.s32 %v397, 48
        %399 = vset.pattern.permute.xlu0 %v398
        %400 = vperm.xlu0 %399, %v359
        %v401 = vpop.permute.xlu0 %400
        %v402 = vlaneseq
        %v403 = vshrl.u32 %v402, 7
        %v404 = vadd.s32 %v403, 56
        %405 = vset.pattern.permute.xlu0 %v404
        %406 = vperm.xlu0 %405, %v359
        %v407 = vpop.permute.xlu0 %406
        %v408 = vmul.f32 %v191, %v365
        %v409 = vmul.f32 %v192, %v365
        %v410 = vmul.f32 %v193, %v371
        %v411 = vmul.f32 %v194, %v371
        %v412 = vmul.f32 %v195, %v377
        %v413 = vmul.f32 %v196, %v377
        %v414 = vmul.f32 %v197, %v383
        %v415 = vmul.f32 %v198, %v383
        %v416 = vmul.f32 %v199, %v389
        %v417 = vmul.f32 %v200, %v389
        %v418 = vmul.f32 %v201, %v395
        %v419 = vmul.f32 %v202, %v395
        %v420 = vmul.f32 %v203, %v401
        %v421 = vmul.f32 %v204, %v401
        %v422 = vmul.f32 %v205, %v407
        %v423 = vmul.f32 %v206, %v407
        %424 = vst [vmem:[%s190] sm:$0xff] %v408
        %425 = vst [vmem:[%s190 + $0x8] sm:$0xff] %v409
        %426 = vst [vmem:[%s190 + $0x10] sm:$0xff] %v410
        %427 = vst [vmem:[%s190 + $0x18] sm:$0xff] %v411
        %428 = vst [vmem:[%s190 + $0x20] sm:$0xff] %v412
        %429 = vst [vmem:[%s190 + $0x28] sm:$0xff] %v413
        %430 = vst [vmem:[%s190 + $0x30] sm:$0xff] %v414
        %431 = vst [vmem:[%s190 + $0x38] sm:$0xff] %v415
        %432 = vst [vmem:[%s190 + $0x40] sm:$0xff] %v416
        %433 = vst [vmem:[%s190 + $0x48] sm:$0xff] %v417
        %434 = vst [vmem:[%s190 + $0x50] sm:$0xff] %v418
        %435 = vst [vmem:[%s190 + $0x58] sm:$0xff] %v419
        %436 = vst [vmem:[%s190 + $0x60] sm:$0xff] %v420
        %437 = vst [vmem:[%s190 + $0x68] sm:$0xff] %v421
        %438 = vst [vmem:[%s190 + $0x70] sm:$0xff] %v422
        %439 = vst [vmem:[%s190 + $0x78] sm:$0xff] %v423
        %s440 = sand.u32 %s96, 1
        %s441 = scalar_lea.sflag [#allocation4], %s440
        %s442 = sand.u32 %s96, 1
        %s443 = smul.addr %s442, 128
        %s444 = scalar_lea.vmem [#allocation5], %s443
        // Predicated region
        $region37: #{tpu_custom_call.1} parent=31 // pred_check
          %p445 = pneg %p106
        $region38: #{tpu_custom_call.1} parent=31 // pred_check_branch
          %447 = sbr.rel (%p445) target = $region40
        $region39: #{tpu_custom_call.1} parent=31 // pred_region
          %449 = vsyncadd %s441, 0
          %s450 = smul.addr %s20, 16
          %s451 = smul.addr %s450, 8
          %s452 = scalar_lea.hbm %s3, %s451
          %s453 = sshll.u32 %s444, 4
          %s454 = int_to_ptr.vmem [resolvable:$true] %s453
          %s455 = sshll.u32 %s452, 4
          %s456 = int_to_ptr.hbm [resolvable:$true] %s455
          %461 = dma.vmem_to_hbm [thread:$0]  %s454, 2048, %s456, %s441, 256, 256, 16
        $region40: #{tpu_custom_call.1} parent=31 // pred_fallthru
          _
      $region32: #{tpu_custom_call.1} parent=5 // pred_fallthru
        _
      %p462 = scmp.le.s32.totalorder 2, %s15
      // Predicated region
      $region41: #{tpu_custom_call.1} parent=5 // pred_check
        %p463 = pneg %p462
      $region42: #{tpu_custom_call.1} parent=5 // pred_check_branch
        %465 = sbr.rel (%p463) target = $region44
      $region43: #{tpu_custom_call.1} parent=5 // pred_region
        %s466 = ssub.s32 %s15, 2
        // Predicated region
        $region45: #{tpu_custom_call.1} parent=43 // pred_check
          %p467 = pneg %p112
        $region46: #{tpu_custom_call.1} parent=43 // pred_check_branch
          %469 = sbr.rel (%p467) target = $region48
        $region47: #{tpu_custom_call.1} parent=43 // pred_region
          %s470 = sand.u32 %s97, 1
          %s471 = scalar_lea.sflag [#allocation4], %s470
          %s472 = sand.u32 %s97, 1
          %s473 = smul.addr %s472, 128
          %s474 = scalar_lea.vmem [#allocation5], %s473
          %476 = dma.done %s471, 2048
        $region48: #{tpu_custom_call.1} parent=43 // pred_fallthru
          _
      $region44: #{tpu_custom_call.1} parent=5 // pred_fallthru
        _
    $region6: #{tpu_custom_call.1} parent=1 // loop_footer
      %s19 = sadd.s32 1, %s15
    $region7: #{tpu_custom_call.1} parent=1 // loop_footer_branch
      %14 = sbr.rel target = $region3
    $region8: #{tpu_custom_call.1} parent=1 // loop_exit
      _
    %477 = vsyncpa [#allocation3], 1
    %s478 = scalar_lea.sflag [#allocation3], 1
    %479 = vsyncpa %s478, 1
    %480 = vsyncpa [#allocation4], 1
    %s481 = scalar_lea.sflag [#allocation4], 1
    %482 = vsyncpa %s481, 1

</llo_original>
